<compile_context>
chip_gen: v6e
topology: v6e:2x2x1
jax: 0.10.0
libtpu: 0.0.40
codegen_flags: <defaults>
</compile_context>

<pallas_src>
import jax
import jax.numpy as jnp
from jax.experimental import pallas as pl
from jax.experimental.pallas import tpu as pltpu


def vae_encoder_kernel(xT_ref, w1_ref, b1_ref, w23_ref, b23_ref, epsT_ref, out_ref):
    latent = epsT_ref.shape[0]                       # static Python int

    xT = xT_ref[...]                                 # (n_state, TILE_B)   lane-dense

    # linear1 + ReLU:  h = relu(W1 @ x^T + b1)        (hidden, TILE_B)
    h = jnp.maximum(
        jnp.dot(w1_ref[...], xT, preferred_element_type=jnp.float32) + b1_ref[...],
        0.0,
    )

    # Fused linear2/linear3: one matmul -> [mu ; log_sigma]   (2*latent, TILE_B)
    ml = jnp.dot(w23_ref[...], h, preferred_element_type=jnp.float32) + b23_ref[...]
    mu = ml[:latent, :]
    log_sigma = ml[latent:, :]
    sigma = jnp.exp(log_sigma)

    # Reparameterized sample.
    eps = epsT_ref[...]                               # (latent, TILE_B)
    z = mu + sigma * eps

    # kl = sum_d [ log q(z|mu,sigma) - log p(z|0,1) ]
    #    = sum_d [ 0.5*z^2 - 0.5*eps^2 - log_sigma ]   (constants cancel, (z-mu)/sigma == eps)
    kl = jnp.sum(0.5 * (z * z - eps * eps) - log_sigma, axis=0, keepdims=True)  # (1, TILE_B)

    # Single lane-dense output slab: rows [0, latent) = z, row latent = kl.
    out_ref[:latent, :] = z
    out_ref[latent:, :] = kl


def variational_encoder_forward(x, params, eps, *, tile_b=128):
    """Forward pass of VariationalEncoder. Returns (z, kl) with z:(B, latent), kl:(B,)."""
    B, n_state = x.shape
    hidden = params["w1"].shape[0]
    latent = params["w2"].shape[0]

    # Fuse linear2 / linear3 (weights are PyTorch-style (out, in)).
    w23 = jnp.concatenate([params["w2"], params["w3"]], axis=0)          # (2*latent, hidden)
    b23 = jnp.concatenate([params["b2"], params["b3"]], axis=0).reshape(2 * latent, 1)
    b1 = params["b1"].reshape(hidden, 1)

    # Batch on the lane axis, padded up to a multiple of the batch tile.
    n_tiles = max(pl.cdiv(B, tile_b), 1)
    Bp = n_tiles * tile_b
    xT = jnp.zeros((n_state, Bp), jnp.float32).at[:, :B].set(x.T)
    epsT = jnp.zeros((latent, Bp), jnp.float32).at[:, :B].set(eps.T)

    out = pl.pallas_call(
        vae_encoder_kernel,
        out_shape=jax.ShapeDtypeStruct((latent + 1, Bp), jnp.float32),
        grid_spec=pltpu.PrefetchScalarGridSpec(
            num_scalar_prefetch=0,
            grid=(n_tiles,),
            in_specs=[
                pl.BlockSpec((n_state, tile_b), lambda i: (0, i)),       # x^T tile
                pl.BlockSpec((hidden, n_state), lambda i: (0, 0)),       # W1 (resident)
                pl.BlockSpec((hidden, 1), lambda i: (0, 0)),             # b1 (resident)
                pl.BlockSpec((2 * latent, hidden), lambda i: (0, 0)),    # [W2;W3] (resident)
                pl.BlockSpec((2 * latent, 1), lambda i: (0, 0)),         # [b2;b3] (resident)
                pl.BlockSpec((latent, tile_b), lambda i: (0, i)),        # eps^T tile
            ],
            out_specs=pl.BlockSpec((latent + 1, tile_b), lambda i: (0, i)),
        ),
        compiler_params=pltpu.CompilerParams(dimension_semantics=("parallel",)),
    )(xT, params["w1"], b1, w23, b23, epsT)

    z = out[:latent, :B].T       # (B, latent)
    kl = out[latent, :B]         # (B,)
    return z, kl


def init_params(key, n_state, hidden, latent_dims):
    """Deterministic PyTorch nn.Linear-style init; weights stored as (out, in)."""
    ks = jax.random.split(key, 6)

    def linear(kw, kb, fan_in, fan_out):
        bound = 1.0 / jnp.sqrt(jnp.float32(fan_in))
        w = jax.random.uniform(kw, (fan_out, fan_in), jnp.float32, -bound, bound)
        b = jax.random.uniform(kb, (fan_out,), jnp.float32, -bound, bound)
        return w, b

    w1, b1 = linear(ks[0], ks[1], n_state, hidden)
    w2, b2 = linear(ks[2], ks[3], hidden, latent_dims)
    w3, b3 = linear(ks[4], ks[5], hidden, latent_dims)
    return {"w1": w1, "b1": b1, "w2": w2, "b2": b2, "w3": w3, "b3": b3}


def reference_forward(x, params, eps):
    """Pure-JAX reference matching the PyTorch module (Monte-Carlo KL form)."""
    hp = jax.lax.Precision.HIGHEST
    h = jnp.maximum(jnp.dot(x, params["w1"].T, precision=hp) + params["b1"], 0.0)
    mu = jnp.dot(h, params["w2"].T, precision=hp) + params["b2"]
    sigma = jnp.exp(jnp.dot(h, params["w3"].T, precision=hp) + params["b3"])
    z = mu + sigma * eps
    c = 0.5 * jnp.log(2.0 * jnp.pi)
    log_q = -jnp.log(sigma) - c - 0.5 * ((z - mu) / sigma) ** 2
    log_p = -c - 0.5 * z * z
    kl = jnp.sum(log_q - log_p, axis=-1)
    return z, kl


if __name__ == "__main__":
    # Pendulum-v0: observation dim = 3.
    n_state = 3
    hidden = 48
    latent_dims = 8
    batch = 200          # exercises the batch grid (2 tiles of 128) and the padding path

    root = jax.random.PRNGKey(0)
    k_params, k_x, k_eps = jax.random.split(root, 3)

    params = init_params(k_params, n_state, hidden, latent_dims)
    x = jax.random.normal(k_x, (batch, n_state), jnp.float32)
    eps = jax.random.normal(k_eps, (batch, latent_dims), jnp.float32)  # self.N.sample(mu.shape)

    z, kl = variational_encoder_forward(x, params, eps)
    jax.block_until_ready((z, kl))

    assert z.shape == (batch, latent_dims)
    assert kl.shape == (batch,)

    # Structural-correctness check against the pure-JAX reference (loose tolerances to
    # absorb any MXU-precision difference between Pallas and XLA matmul lowerings).
    z_ref, kl_ref = reference_forward(x, params, eps)
    assert bool(jnp.all(jnp.isfinite(z))) and bool(jnp.all(jnp.isfinite(kl)))
    assert float(jnp.max(jnp.abs(z - z_ref))) < 5e-2
    assert float(jnp.max(jnp.abs(kl - kl_ref))) < 5e-1

    print("KERNEL_OK")
</pallas_src>

<mosaic_0001>
module attributes {stable_mosaic.version = 11 : i64} {
  func.func @vae_encoder_kernel(%arg0: i32, %arg1: memref<3x128xf32, #tpu.memory_space<vmem>>, %arg2: memref<48x3xf32, #tpu.memory_space<vmem>>, %arg3: memref<48x1xf32, #tpu.memory_space<vmem>>, %arg4: memref<16x48xf32, #tpu.memory_space<vmem>>, %arg5: memref<16x1xf32, #tpu.memory_space<vmem>>, %arg6: memref<8x128xf32, #tpu.memory_space<vmem>>, %arg7: memref<9x128xf32, #tpu.memory_space<vmem>>) attributes {dimension_semantics = [#tpu.dimension_semantics<parallel>], iteration_bounds = array<i64: 2>, scalar_prefetch = 0 : i64, scratch_operands = 0 : i64, tpu.core_type = #tpu.core_type<tc>, window_params = [{transform_indices = @transform_0, window_bounds = array<i64: 3, 128>}, {pipeline_mode = #tpu.pipeline_mode<synchronous>, transform_indices = @transform_1, window_bounds = array<i64: 48, 3>}, {pipeline_mode = #tpu.pipeline_mode<synchronous>, transform_indices = @transform_2, window_bounds = array<i64: 48, 1>}, {pipeline_mode = #tpu.pipeline_mode<synchronous>, transform_indices = @transform_3, window_bounds = array<i64: 16, 48>}, {pipeline_mode = #tpu.pipeline_mode<synchronous>, transform_indices = @transform_4, window_bounds = array<i64: 16, 1>}, {transform_indices = @transform_5, window_bounds = array<i64: 8, 128>}, {transform_indices = @transform_6, window_bounds = array<i64: 9, 128>}]} {
    %c0 = arith.constant 0 : index
    %c0_0 = arith.constant 0 : index
    %0 = vector.load %arg1[%c0, %c0_0] : memref<3x128xf32, #tpu.memory_space<vmem>>, vector<3x128xf32>
    %c0_1 = arith.constant 0 : index
    %c0_2 = arith.constant 0 : index
    %1 = vector.load %arg2[%c0_1, %c0_2] : memref<48x3xf32, #tpu.memory_space<vmem>>, vector<48x3xf32>
    %cst = arith.constant dense<0.000000e+00> : vector<48x128xf32>
    %2 = tpu.matmul %1, %0, %cst {dimension_numbers = #tpu.dot_dimension_numbers<[1], [0], [0], [1], [0, 0, 1, 1], [], []>} : vector<48x3xf32>, vector<3x128xf32>, vector<48x128xf32> -> vector<48x128xf32>
    %c0_3 = arith.constant 0 : index
    %c0_4 = arith.constant 0 : index
    %3 = vector.load %arg3[%c0_3, %c0_4] : memref<48x1xf32, #tpu.memory_space<vmem>>, vector<48x1xf32>
    %4 = vector.broadcast %3 : vector<48x1xf32> to vector<48x128xf32>
    %5 = arith.addf %2, %4 : vector<48x128xf32>
    %cst_5 = arith.constant 0.000000e+00 : f32
    %6 = vector.broadcast %cst_5 : f32 to vector<48x128xf32>
    %7 = arith.maximumf %5, %6 : vector<48x128xf32>
    %c0_6 = arith.constant 0 : index
    %c0_7 = arith.constant 0 : index
    %8 = vector.load %arg4[%c0_6, %c0_7] : memref<16x48xf32, #tpu.memory_space<vmem>>, vector<16x48xf32>
    %cst_8 = arith.constant dense<0.000000e+00> : vector<16x128xf32>
    %9 = tpu.matmul %8, %7, %cst_8 {dimension_numbers = #tpu.dot_dimension_numbers<[1], [0], [0], [1], [0, 0, 1, 1], [], []>} : vector<16x48xf32>, vector<48x128xf32>, vector<16x128xf32> -> vector<16x128xf32>
    %c0_9 = arith.constant 0 : index
    %c0_10 = arith.constant 0 : index
    %10 = vector.load %arg5[%c0_9, %c0_10] : memref<16x1xf32, #tpu.memory_space<vmem>>, vector<16x1xf32>
    %11 = vector.broadcast %10 : vector<16x1xf32> to vector<16x128xf32>
    %12 = arith.addf %9, %11 : vector<16x128xf32>
    %13 = vector.extract_strided_slice %12 {offsets = [0, 0], sizes = [8, 128], strides = [1, 1]} : vector<16x128xf32> to vector<8x128xf32>
    %14 = vector.extract_strided_slice %12 {offsets = [8, 0], sizes = [8, 128], strides = [1, 1]} : vector<16x128xf32> to vector<8x128xf32>
    %15 = math.exp %14 : vector<8x128xf32>
    %c0_11 = arith.constant 0 : index
    %c0_12 = arith.constant 0 : index
    %16 = vector.load %arg6[%c0_11, %c0_12] : memref<8x128xf32, #tpu.memory_space<vmem>>, vector<8x128xf32>
    %17 = arith.mulf %15, %16 : vector<8x128xf32>
    %18 = arith.addf %13, %17 : vector<8x128xf32>
    %19 = arith.mulf %18, %18 : vector<8x128xf32>
    %20 = arith.mulf %16, %16 : vector<8x128xf32>
    %21 = arith.subf %19, %20 : vector<8x128xf32>
    %cst_13 = arith.constant 5.000000e-01 : f32
    %22 = vector.broadcast %cst_13 : f32 to vector<8x128xf32>
    %23 = arith.mulf %22, %21 : vector<8x128xf32>
    %24 = arith.subf %23, %14 : vector<8x128xf32>
    %cst_14 = arith.constant dense<0.000000e+00> : vector<128xf32>
    %25 = vector.multi_reduction <add>, %24, %cst_14 [0] : vector<8x128xf32> to vector<128xf32>
    %26 = vector.shape_cast %25 : vector<128xf32> to vector<1x128xf32>
    %c0_15 = arith.constant 0 : index
    %c0_16 = arith.constant 0 : index
    %27 = vector.load %arg7[%c0_15, %c0_16] : memref<9x128xf32, #tpu.memory_space<vmem>>, vector<8x128xf32>
    tpu.vector_store %arg7[%c0_15, %c0_16], %18 {strides = array<i32>} : memref<9x128xf32, #tpu.memory_space<vmem>>, vector<8x128xf32>,
    %c8 = arith.constant 8 : index
    %c0_17 = arith.constant 0 : index
    %28 = vector.load %arg7[%c8, %c0_17] : memref<9x128xf32, #tpu.memory_space<vmem>>, vector<1x128xf32>
    tpu.vector_store %arg7[%c8, %c0_17], %26 {strides = array<i32>} : memref<9x128xf32, #tpu.memory_space<vmem>>, vector<1x128xf32>,
    return
  }
  func.func @transform_0(%arg0: i32) -> (i32, i32) {
    %c0_i32 = arith.constant 0 : i32
    %c0_i32_0 = arith.constant 0 : i32
    return %c0_i32, %arg0 : i32, i32
  }
  func.func @transform_1(%arg0: i32) -> (i32, i32) {
    %c0_i32 = arith.constant 0 : i32
    %c0_i32_0 = arith.constant 0 : i32
    %c0_i32_1 = arith.constant 0 : i32
    return %c0_i32, %c0_i32_0 : i32, i32
  }
  func.func @transform_2(%arg0: i32) -> (i32, i32) {
    %c0_i32 = arith.constant 0 : i32
    %c0_i32_0 = arith.constant 0 : i32
    %c0_i32_1 = arith.constant 0 : i32
    return %c0_i32, %c0_i32_0 : i32, i32
  }
  func.func @transform_3(%arg0: i32) -> (i32, i32) {
    %c0_i32 = arith.constant 0 : i32
    %c0_i32_0 = arith.constant 0 : i32
    %c0_i32_1 = arith.constant 0 : i32
    return %c0_i32, %c0_i32_0 : i32, i32
  }
  func.func @transform_4(%arg0: i32) -> (i32, i32) {
    %c0_i32 = arith.constant 0 : i32
    %c0_i32_0 = arith.constant 0 : i32
    %c0_i32_1 = arith.constant 0 : i32
    return %c0_i32, %c0_i32_0 : i32, i32
  }
  func.func @transform_5(%arg0: i32) -> (i32, i32) {
    %c0_i32 = arith.constant 0 : i32
    %c0_i32_0 = arith.constant 0 : i32
    return %c0_i32, %arg0 : i32, i32
  }
  func.func @transform_6(%arg0: i32) -> (i32, i32) {
    %c0_i32 = arith.constant 0 : i32
    %c0_i32_0 = arith.constant 0 : i32
    return %c0_i32, %arg0 : i32, i32
  }
}

</mosaic_0001>

<llo_original>
// kernel: tpu_custom_call.1
$region0: #{tpu_custom_call.1}
  #allocation0 [shape = 'u32[]', space=smem, size = 0x4, offset = 0x4, fixed_abs, tag = 'smem constant byte address 0x4 - core index']
  #allocation1 [shape = 'u32[144,128]{1,0:T(1,128)}', space=vmem, size = 0x12000, scoped, tag = 'internal scratch']
  %s0 = inlined_call_operand.vmem [shape: f32[3,256], index: 0, kind: input, shape index: {}]
  %s1 = inlined_call_operand.vmem [shape: f32[48,3], index: 1, kind: input, shape index: {}]
  %s2 = inlined_call_operand.vmem [shape: f32[48,1], index: 2, kind: input, shape index: {}]
  %s3 = inlined_call_operand.vmem [shape: f32[16,48], index: 3, kind: input, shape index: {}]
  %s4 = inlined_call_operand.vmem [shape: f32[16,1], index: 4, kind: input, shape index: {}]
  %s5 = inlined_call_operand.vmem [shape: f32[8,256], index: 5, kind: input, shape index: {}]
  %s6 = inlined_call_operand.hbm [shape: f32[9,256], index: 6, kind: output, shape index: {}]
  %s7 = sld [smem:[#allocation0]]
  $region57: #{tpu_custom_call.1} parent=0
    _
  %s9 = ssub.s32 1, %s7
  %s10 = scalar_select 0, %s9, %s7
  $region1: #{tpu_custom_call.1} parent=0
    #allocation2 [shape = 'u8[16384]{0}', space=vmem, size = 0x4000, scoped, tag = 'output window, operand 0']
    #allocation3 [shape = 's32[2]{0}', space=sflag, size = 0x8, scoped, tag = 'scoped memory for tpu_custom_call.1']
    %11 = vsyncpa [#allocation3], 0
    %s12 = scalar_lea.sflag [#allocation3], 1
    %13 = vsyncpa %s12, 0
    loop: start=0, step=1, limit=4
    $region2: #{tpu_custom_call.1} parent=1 // loop_pre_header
      _
    $region3: #{tpu_custom_call.1} parent=1 // loop_header
      %s15 = sphi 0, %s19
      %p16 = scmp.ge.s32.totalorder %s15, 4
      %s25 = sphi 0, %s27
      %s28 = sphi 0, %s25
      %s29 = sphi 0, %s28
      %s45 = sphi 0, %s29
      %s49 = sphi 0, %s49
      %s51 = sphi 0, %s49
      %s52 = sphi 0, %s51
      %s66 = sphi 0, %s52
      %s70 = sphi 0, %s70
      %s72 = sphi 0, %s70
      %s73 = sphi 0, %s72
      %s87 = sphi 0, %s73
      %s91 = sphi 0, %s91
      %s93 = sphi 0, %s91
      %s94 = sphi 0, %s93
      %s108 = sphi 0, %s94
      %s112 = sphi 0, %s112
      %s114 = sphi 0, %s112
      %s115 = sphi 0, %s114
      %s129 = sphi 0, %s115
      %s135 = sphi 0, %s137
      %s138 = sphi 0, %s135
      %s139 = sphi 0, %s138
      %s155 = sphi 0, %s139
      %s161 = sphi 0, %s163
      %s164 = sphi 0, %s161
      %s165 = sphi 0, %s164
      %s181 = sphi 0, %s165
    $region4: #{tpu_custom_call.1} parent=1 // loop_header_branch
      %18 = sbr.rel (%p16) target = $region8
    $region5: #{tpu_custom_call.1} parent=1 // loop_body
      %s20 = ssub.s32 %s15, 1
      %s21 = ssub.s32 %s15, 2
      %s22 = sadd.s32 %s15, 1
      %s23 = ssub.s32 %s15, %s22
      %p24 = scmp.eq.s32.totalorder %s23, 0
      %s26 = sadd.s32 %s25, 1
      %s27 = scalar_select %p24, %s25, %s26
      %p30 = pneg %p24
      %p31 = scmp.eq.s32.totalorder %s15, 1
      %p32 = por %p30, %p31
      %p33 = scmp.ne.s32.totalorder %s25, %s28
      %p34 = scmp.eq.s32.totalorder %s15, 0
      %p35 = por %p33, %p34
      %p36 = scmp.ne.s32.totalorder %s25, %s28
      %p37 = scmp.eq.s32.totalorder %s20, 1
      %p38 = por %p36, %p37
      %p39 = scmp.ne.s32.totalorder %s28, %s29
      %p40 = scmp.eq.s32.totalorder %s20, 0
      %p41 = por %p39, %p40
      %p42 = scmp.ne.s32.totalorder %s28, %s29
      %p43 = scmp.eq.s32.totalorder %s21, 1
      %p44 = por %p42, %p43
      %p46 = scmp.ne.s32.totalorder %s29, %s45
      %p47 = scmp.eq.s32.totalorder %s21, 0
      %p48 = por %p46, %p47
      %s50 = sadd.s32 %s49, 1
      %p53 = scmp.eq.s32.totalorder %s15, 1
      %p54 = scmp.ne.s32.totalorder %s49, %s51
      %p55 = scmp.eq.s32.totalorder %s15, 0
      %p56 = por %p54, %p55
      %p57 = scmp.ne.s32.totalorder %s49, %s51
      %p58 = scmp.eq.s32.totalorder %s20, 1
      %p59 = por %p57, %p58
      %p60 = scmp.ne.s32.totalorder %s51, %s52
      %p61 = scmp.eq.s32.totalorder %s20, 0
      %p62 = por %p60, %p61
      %p63 = scmp.ne.s32.totalorder %s51, %s52
      %p64 = scmp.eq.s32.totalorder %s21, 1
      %p65 = por %p63, %p64
      %p67 = scmp.ne.s32.totalorder %s52, %s66
      %p68 = scmp.eq.s32.totalorder %s21, 0
      %p69 = por %p67, %p68
      %s71 = sadd.s32 %s70, 1
      %p74 = scmp.eq.s32.totalorder %s15, 1
      %p75 = scmp.ne.s32.totalorder %s70, %s72
      %p76 = scmp.eq.s32.totalorder %s15, 0
      %p77 = por %p75, %p76
      %p78 = scmp.ne.s32.totalorder %s70, %s72
      %p79 = scmp.eq.s32.totalorder %s20, 1
      %p80 = por %p78, %p79
      %p81 = scmp.ne.s32.totalorder %s72, %s73
      %p82 = scmp.eq.s32.totalorder %s20, 0
      %p83 = por %p81, %p82
      %p84 = scmp.ne.s32.totalorder %s72, %s73
      %p85 = scmp.eq.s32.totalorder %s21, 1
      %p86 = por %p84, %p85
      %p88 = scmp.ne.s32.totalorder %s73, %s87
      %p89 = scmp.eq.s32.totalorder %s21, 0
      %p90 = por %p88, %p89
      %s92 = sadd.s32 %s91, 1
      %p95 = scmp.eq.s32.totalorder %s15, 1
      %p96 = scmp.ne.s32.totalorder %s91, %s93
      %p97 = scmp.eq.s32.totalorder %s15, 0
      %p98 = por %p96, %p97
      %p99 = scmp.ne.s32.totalorder %s91, %s93
      %p100 = scmp.eq.s32.totalorder %s20, 1
      %p101 = por %p99, %p100
      %p102 = scmp.ne.s32.totalorder %s93, %s94
      %p103 = scmp.eq.s32.totalorder %s20, 0
      %p104 = por %p102, %p103
      %p105 = scmp.ne.s32.totalorder %s93, %s94
      %p106 = scmp.eq.s32.totalorder %s21, 1
      %p107 = por %p105, %p106
      %p109 = scmp.ne.s32.totalorder %s94, %s108
      %p110 = scmp.eq.s32.totalorder %s21, 0
      %p111 = por %p109, %p110
      %s113 = sadd.s32 %s112, 1
      %p116 = scmp.eq.s32.totalorder %s15, 1
      %p117 = scmp.ne.s32.totalorder %s112, %s114
      %p118 = scmp.eq.s32.totalorder %s15, 0
      %p119 = por %p117, %p118
      %p120 = scmp.ne.s32.totalorder %s112, %s114
      %p121 = scmp.eq.s32.totalorder %s20, 1
      %p122 = por %p120, %p121
      %p123 = scmp.ne.s32.totalorder %s114, %s115
      %p124 = scmp.eq.s32.totalorder %s20, 0
      %p125 = por %p123, %p124
      %p126 = scmp.ne.s32.totalorder %s114, %s115
      %p127 = scmp.eq.s32.totalorder %s21, 1
      %p128 = por %p126, %p127
      %p130 = scmp.ne.s32.totalorder %s115, %s129
      %p131 = scmp.eq.s32.totalorder %s21, 0
      %p132 = por %p130, %p131
      %s133 = ssub.s32 %s15, %s22
      %p134 = scmp.eq.s32.totalorder %s133, 0
      %s136 = sadd.s32 %s135, 1
      %s137 = scalar_select %p134, %s135, %s136
      %p140 = pneg %p134
      %p141 = scmp.eq.s32.totalorder %s15, 1
      %p142 = por %p140, %p141
      %p143 = scmp.ne.s32.totalorder %s135, %s138
      %p144 = scmp.eq.s32.totalorder %s15, 0
      %p145 = por %p143, %p144
      %p146 = scmp.ne.s32.totalorder %s135, %s138
      %p147 = scmp.eq.s32.totalorder %s20, 1
      %p148 = por %p146, %p147
      %p149 = scmp.ne.s32.totalorder %s138, %s139
      %p150 = scmp.eq.s32.totalorder %s20, 0
      %p151 = por %p149, %p150
      %p152 = scmp.ne.s32.totalorder %s138, %s139
      %p153 = scmp.eq.s32.totalorder %s21, 1
      %p154 = por %p152, %p153
      %p156 = scmp.ne.s32.totalorder %s139, %s155
      %p157 = scmp.eq.s32.totalorder %s21, 0
      %p158 = por %p156, %p157
      %s159 = ssub.s32 %s15, %s22
      %p160 = scmp.eq.s32.totalorder %s159, 0
      %s162 = sadd.s32 %s161, 1
      %s163 = scalar_select %p160, %s161, %s162
      %p166 = pneg %p160
      %p167 = scmp.eq.s32.totalorder %s15, 1
      %p168 = por %p166, %p167
      %p169 = scmp.ne.s32.totalorder %s161, %s164
      %p170 = scmp.eq.s32.totalorder %s15, 0
      %p171 = por %p169, %p170
      %p172 = scmp.ne.s32.totalorder %s161, %s164
      %p173 = scmp.eq.s32.totalorder %s20, 1
      %p174 = por %p172, %p173
      %p175 = scmp.ne.s32.totalorder %s164, %s165
      %p176 = scmp.eq.s32.totalorder %s20, 0
      %p177 = por %p175, %p176
      %p178 = scmp.ne.s32.totalorder %s164, %s165
      %p179 = scmp.eq.s32.totalorder %s21, 1
      %p180 = por %p178, %p179
      %p182 = scmp.ne.s32.totalorder %s165, %s181
      %p183 = scmp.eq.s32.totalorder %s21, 0
      %p184 = por %p182, %p183
      %p185 = scmp.le.s32.totalorder 1, %s15
      %p186 = scmp.lt.s32.totalorder %s15, 3
      %p187 = pnand %p185, %p186
      %p188 = pneg %p187
      // Predicated region
      $region9: #{tpu_custom_call.1} parent=5 // pred_check
        _
      $region10: #{tpu_custom_call.1} parent=5 // pred_check_branch
        %190 = sbr.rel (%p187) target = $region12
      $region11: #{tpu_custom_call.1} parent=5 // pred_region
        %s191 = ssub.s32 %s15, 1
        // Predicated region
        $region13: #{tpu_custom_call.1} parent=11 // pred_check
          %p192 = pneg %p62
        $region14: #{tpu_custom_call.1} parent=11 // pred_check_branch
          %194 = sbr.rel (%p192) target = $region16
        $region15: #{tpu_custom_call.1} parent=11 // pred_region
          _
        $region16: #{tpu_custom_call.1} parent=11 // pred_fallthru
          _
        // Predicated region
        $region17: #{tpu_custom_call.1} parent=11 // pred_check
          %p195 = pneg %p83
        $region18: #{tpu_custom_call.1} parent=11 // pred_check_branch
          %197 = sbr.rel (%p195) target = $region20
        $region19: #{tpu_custom_call.1} parent=11 // pred_region
          _
        $region20: #{tpu_custom_call.1} parent=11 // pred_fallthru
          _
        // Predicated region
        $region21: #{tpu_custom_call.1} parent=11 // pred_check
          %p198 = pneg %p104
        $region22: #{tpu_custom_call.1} parent=11 // pred_check_branch
          %200 = sbr.rel (%p198) target = $region24
        $region23: #{tpu_custom_call.1} parent=11 // pred_region
          _
        $region24: #{tpu_custom_call.1} parent=11 // pred_fallthru
          _
        // Predicated region
        $region25: #{tpu_custom_call.1} parent=11 // pred_check
          %p201 = pneg %p125
        $region26: #{tpu_custom_call.1} parent=11 // pred_check_branch
          %203 = sbr.rel (%p201) target = $region28
        $region27: #{tpu_custom_call.1} parent=11 // pred_region
          _
        $region28: #{tpu_custom_call.1} parent=11 // pred_fallthru
          _
      $region12: #{tpu_custom_call.1} parent=5 // pred_fallthru
        _
      %p204 = scmp.lt.s32.totalorder %s15, 2
      // Predicated region
      $region29: #{tpu_custom_call.1} parent=5 // pred_check
        %p205 = pneg %p204
      $region30: #{tpu_custom_call.1} parent=5 // pred_check_branch
        %207 = sbr.rel (%p205) target = $region32
      $region31: #{tpu_custom_call.1} parent=5 // pred_region
        // Predicated region
        $region33: #{tpu_custom_call.1} parent=31 // pred_check
          %p208 = pneg %p35
        $region34: #{tpu_custom_call.1} parent=31 // pred_check_branch
          %210 = sbr.rel (%p208) target = $region36
        $region35: #{tpu_custom_call.1} parent=31 // pred_region
          %p211 = scmp.lt.s32.totalorder %s15, 1
          %s212 = scalar_select %p211, %s15, 1
          %s213 = smul.addr %s212, 4
          %s214 = scalar_lea.vmem %s0, %s213
        $region36: #{tpu_custom_call.1} parent=31 // pred_fallthru
          _
        // Predicated region
        $region37: #{tpu_custom_call.1} parent=31 // pred_check
          %p215 = pneg %p145
        $region38: #{tpu_custom_call.1} parent=31 // pred_check_branch
          %217 = sbr.rel (%p215) target = $region40
        $region39: #{tpu_custom_call.1} parent=31 // pred_region
          %p218 = scmp.lt.s32.totalorder %s15, 1
          %s219 = scalar_select %p218, %s15, 1
          %s220 = smul.addr %s219, 8
          %s221 = scalar_lea.vmem %s5, %s220
        $region40: #{tpu_custom_call.1} parent=31 // pred_fallthru
          _
      $region32: #{tpu_custom_call.1} parent=5 // pred_fallthru
        _
      %p222 = scmp.le.s32.totalorder 1, %s15
      %p223 = scmp.lt.s32.totalorder %s15, 3
      %p224 = pnand %p222, %p223
      %p225 = pneg %p224
      // Predicated region
      $region41: #{tpu_custom_call.1} parent=5 // pred_check
        _
      $region42: #{tpu_custom_call.1} parent=5 // pred_check_branch
        %227 = sbr.rel (%p224) target = $region44
      $region43: #{tpu_custom_call.1} parent=5 // pred_region
        %s228 = ssub.s32 %s15, 1
        %p229 = scmp.lt.s32.totalorder %s20, 1
        %s230 = scalar_select %p229, %s20, 1
        %s231 = smul.addr %s230, 4
        %s232 = scalar_lea.vmem %s0, %s231
        %p233 = pneg %p41
        %p234 = pneg %p38
        %p235 = pneg %p62
        %p236 = pneg %p59
        %p237 = pneg %p83
        %p238 = pneg %p80
        %p239 = pneg %p104
        %p240 = pneg %p101
        %p241 = pneg %p125
        %p242 = pneg %p122
        %p243 = scmp.lt.s32.totalorder %s20, 1
        %s244 = scalar_select %p243, %s20, 1
        %s245 = smul.addr %s244, 8
        %s246 = scalar_lea.vmem %s5, %s245
        %p247 = pneg %p151
        %p248 = pneg %p148
        %p249 = pneg %p177
        %p250 = pneg %p174
        %s251 = sand.u32 %s164, 1
        %s252 = scalar_lea.sflag [#allocation3], %s251
        %s253 = sand.u32 %s164, 1
        %s254 = smul.addr %s253, 16
        %s255 = scalar_lea.vmem [#allocation2], %s254
        %p256 = scmp.lt.s32.totalorder %s20, 1
        %s257 = scalar_select %p256, %s20, 1
        %s258 = smul.addr %s257, 4
        %s259 = scalar_lea.vmem %s0, %s258
        %p260 = scmp.lt.s32.totalorder %s20, 1
        %s261 = scalar_select %p260, %s20, 1
        %s262 = smul.addr %s261, 8
        %s263 = scalar_lea.vmem %s5, %s262
        %v264 = vld [vmem:[%s259] sm:$0x7]
        %v265 = vld [vmem:[%s1] sm:$0xff]
        %v266 = vld [vmem:[%s1 + $0x8] sm:$0xff]
        %v267 = vld [vmem:[%s1 + $0x10] sm:$0xff]
        %v268 = vld [vmem:[%s1 + $0x18] sm:$0xff]
        %v269 = vld [vmem:[%s1 + $0x20] sm:$0xff]
        %v270 = vld [vmem:[%s1 + $0x28] sm:$0xff]
        %v271 = vld [vmem:[%s2] sm:$0xff]
        %v272 = vld [vmem:[%s2 + $0x8] sm:$0xff]
        %v273 = vld [vmem:[%s2 + $0x10] sm:$0xff]
        %v274 = vld [vmem:[%s2 + $0x18] sm:$0xff]
        %v275 = vld [vmem:[%s2 + $0x20] sm:$0xff]
        %v276 = vld [vmem:[%s2 + $0x28] sm:$0xff]
        %278 = vset.pattern.permute.xlu0 0
        %279 = vperm.xlu0 %278, %v271
        %v280 = vpop.permute.xlu0 %279
        %283 = vset.pattern.permute.xlu0 0
        %284 = vperm.xlu0 %283, %v272
        %v285 = vpop.permute.xlu0 %284
        %288 = vset.pattern.permute.xlu0 0
        %289 = vperm.xlu0 %288, %v273
        %v290 = vpop.permute.xlu0 %289
        %293 = vset.pattern.permute.xlu0 0
        %294 = vperm.xlu0 %293, %v274
        %v295 = vpop.permute.xlu0 %294
        %298 = vset.pattern.permute.xlu0 0
        %299 = vperm.xlu0 %298, %v275
        %v300 = vpop.permute.xlu0 %299
        %303 = vset.pattern.permute.xlu0 0
        %304 = vperm.xlu0 %303, %v276
        %v305 = vpop.permute.xlu0 %304
        %vm307 = vcmask 23552
        %v309 = vsel %vm307, %v265, 0
        %v312 = vsel %vm307, %v266, 0
        %v315 = vsel %vm307, %v267, 0
        %v318 = vsel %vm307, %v268, 0
        %v321 = vsel %vm307, %v269, 0
        %v324 = vsel %vm307, %v270, 0
        %vm326 = vcmask 1042432
        %v328 = vsel %vm326, %v264, 0
        %330 = vmatprep.subr.mxu0 0.0
        %331 = vmatpush1.msra.mxu0 0.0
        %332 = vmatprep.subr.mxu0 0.0
        %333 = vmatpush1.msra.mxu0 0.0
        %334 = vmatprep.subr.mxu0 0.0
        %335 = vmatpush1.msra.mxu0 0.0
        %336 = vmatprep.subr.mxu0 0.0
        %337 = vmatpush1.msra.mxu0 0.0
        %338 = vmatprep.subr.mxu0 0.0
        %339 = vmatpush1.msra.mxu0 0.0
        %340 = vmatprep.subr.mxu0 0.0
        %341 = vmatpush1.msra.mxu0 0.0
        %342 = vmatprep.subr.mxu0 0.0
        %343 = vmatpush1.msra.mxu0 0.0
        %344 = vmatprep.subr.mxu0 0.0
        %345 = vmatpush1.msra.mxu0 0.0
        %346 = vmatprep.subr.mxu0 0.0
        %347 = vmatpush1.msra.mxu0 0.0
        %348 = vmatprep.subr.mxu0 0.0
        %349 = vmatpush1.msra.mxu0 0.0
        %350 = vmatprep.subr.mxu0 0.0
        %351 = vmatpush1.msra.mxu0 0.0
        %352 = vmatprep.subr.mxu0 0.0
        %353 = vmatpush1.msra.mxu0 0.0
        %354 = vmatprep.subr.mxu0 0.0
        %355 = vmatpush1.msra.mxu0 0.0
        %356 = vmatprep.subr.mxu0 0.0
        %357 = vmatpush1.msra.mxu0 0.0
        %358 = vmatprep.subr.mxu0 0.0
        %359 = vmatpush1.msra.mxu0 0.0
        %360 = vmatprep.subr.mxu0 0.0
        %361 = vmatpush1.msra.mxu0 %v328
        %362 = vmatprep.subr.mxu0 0.0
        %363 = vmatpush2.msra.mxu0 0.0
        %364 = vmatprep.subr.mxu0 0.0
        %365 = vmatpush2.msra.mxu0 0.0
        %366 = vmatprep.subr.mxu0 0.0
        %367 = vmatpush2.msra.mxu0 0.0
        %368 = vmatprep.subr.mxu0 0.0
        %369 = vmatpush2.msra.mxu0 0.0
        %370 = vmatprep.subr.mxu0 0.0
        %371 = vmatpush2.msra.mxu0 0.0
        %372 = vmatprep.subr.mxu0 0.0
        %373 = vmatpush2.msra.mxu0 0.0
        %374 = vmatprep.subr.mxu0 0.0
        %375 = vmatpush2.msra.mxu0 0.0
        %376 = vmatprep.subr.mxu0 0.0
        %377 = vmatpush2.msra.mxu0 0.0
        %378 = vmatprep.subr.mxu0 0.0
        %379 = vmatpush2.msra.mxu0 0.0
        %380 = vmatprep.subr.mxu0 0.0
        %381 = vmatpush2.msra.mxu0 0.0
        %382 = vmatprep.subr.mxu0 0.0
        %383 = vmatpush2.msra.mxu0 0.0
        %384 = vmatprep.subr.mxu0 0.0
        %385 = vmatpush2.msra.mxu0 0.0
        %386 = vmatprep.subr.mxu0 0.0
        %387 = vmatpush2.msra.mxu0 0.0
        %388 = vmatprep.subr.mxu0 0.0
        %389 = vmatpush2.msra.mxu0 0.0
        %390 = vmatprep.subr.mxu0 0.0
        %391 = vmatpush2.msra.mxu0 0.0
        %392 = vmatprep.subr.mxu0 0.0
        %393 = vmatpush2.msra.mxu0 0.0
        %394 = vmatprep.mubr.f32.mxu0 0.0
        %395 = vmatmul.mubr.f32.gmra.mxu0 %v309
        %v396 = vpop.f32.mrf.mxu0
        %v397 = vadd.f32 %v280, %v396
        %v398 = vpop.f32.mrf.mxu0
        %399 = vmatprep.mubr.f32.mxu0 0.0
        %400 = vmatmul.mubr.f32.gmra.mxu0 %v312
        %v401 = vpop.f32.mrf.mxu0
        %v402 = vadd.f32 %v285, %v401
        %v403 = vpop.f32.mrf.mxu0
        %404 = vmatprep.mubr.f32.mxu0 0.0
        %405 = vmatmul.mubr.f32.gmra.mxu0 %v315
        %v406 = vpop.f32.mrf.mxu0
        %v407 = vadd.f32 %v290, %v406
        %v408 = vpop.f32.mrf.mxu0
        %409 = vmatprep.mubr.f32.mxu0 0.0
        %410 = vmatmul.mubr.f32.gmra.mxu0 %v318
        %v411 = vpop.f32.mrf.mxu0
        %v412 = vadd.f32 %v295, %v411
        %v413 = vpop.f32.mrf.mxu0
        %414 = vmatprep.mubr.f32.mxu0 0.0
        %415 = vmatmul.mubr.f32.gmra.mxu0 %v321
        %v416 = vpop.f32.mrf.mxu0
        %v417 = vadd.f32 %v300, %v416
        %v418 = vpop.f32.mrf.mxu0
        %419 = vmatprep.mubr.f32.mxu0 0.0
        %420 = vmatmul.mubr.f32.gmra.mxu0 %v324
        %v421 = vpop.f32.mrf.mxu0
        %v422 = vadd.f32 %v305, %v421
        %v423 = vpop.f32.mrf.mxu0
        %424 = vdwg.mxu0
        %v425 = vmax.f32 %v397, 0.0
        %v426 = vmax.f32 %v402, 0.0
        %v427 = vmax.f32 %v407, 0.0
        %v428 = vmax.f32 %v412, 0.0
        %v429 = vmax.f32 %v417, 0.0
        %v430 = vmax.f32 %v422, 0.0
        %v431 = vld [vmem:[%s3] sm:$0xff]
        %v432 = vld [vmem:[%s3 + $0x8] sm:$0xff]
        %v433 = vld [vmem:[%s4] sm:$0xff]
        %v434 = vld [vmem:[%s4 + $0x8] sm:$0xff]
        %436 = vset.pattern.permute.xlu0 0
        %437 = vperm.xlu0 %436, %v433
        %v438 = vpop.permute.xlu0 %437
        %441 = vset.pattern.permute.xlu0 0
        %442 = vperm.xlu0 %441, %v434
        %v443 = vpop.permute.xlu0 %442
        %vm445 = vcmask 392192
        %v447 = vsel %vm445, %v431, 0
        %v450 = vsel %vm445, %v432, 0
        %452 = vmatprep.subr.mxu0 0.0
        %453 = vmatpush1.msra.mxu0 0.0
        %454 = vmatprep.subr.mxu0 0.0
        %455 = vmatpush1.msra.mxu0 0.0
        %456 = vmatprep.subr.mxu0 0.0
        %457 = vmatpush1.msra.mxu0 0.0
        %458 = vmatprep.subr.mxu0 0.0
        %459 = vmatpush1.msra.mxu0 0.0
        %460 = vmatprep.subr.mxu0 0.0
        %461 = vmatpush1.msra.mxu0 0.0
        %462 = vmatprep.subr.mxu0 0.0
        %463 = vmatpush1.msra.mxu0 0.0
        %464 = vmatprep.subr.mxu0 0.0
        %465 = vmatpush1.msra.mxu0 0.0
        %466 = vmatprep.subr.mxu0 0.0
        %467 = vmatpush1.msra.mxu0 0.0
        %468 = vmatprep.subr.mxu0 0.0
        %469 = vmatpush1.msra.mxu0 0.0
        %470 = vmatprep.subr.mxu0 0.0
        %471 = vmatpush1.msra.mxu0 0.0
        %472 = vmatprep.subr.mxu0 0.0
        %473 = vmatpush1.msra.mxu0 %v430
        %474 = vmatprep.subr.mxu0 0.0
        %475 = vmatpush1.msra.mxu0 %v429
        %476 = vmatprep.subr.mxu0 0.0
        %477 = vmatpush1.msra.mxu0 %v428
        %478 = vmatprep.subr.mxu0 0.0
        %479 = vmatpush1.msra.mxu0 %v427
        %480 = vmatprep.subr.mxu0 0.0
        %481 = vmatpush1.msra.mxu0 %v426
        %482 = vmatprep.subr.mxu0 0.0
        %483 = vmatpush1.msra.mxu0 %v425
        %484 = vmatprep.subr.mxu0 0.0
        %485 = vmatpush2.msra.mxu0 0.0
        %486 = vmatprep.subr.mxu0 0.0
        %487 = vmatpush2.msra.mxu0 0.0
        %488 = vmatprep.subr.mxu0 0.0
        %489 = vmatpush2.msra.mxu0 0.0
        %490 = vmatprep.subr.mxu0 0.0
        %491 = vmatpush2.msra.mxu0 0.0
        %492 = vmatprep.subr.mxu0 0.0
        %493 = vmatpush2.msra.mxu0 0.0
        %494 = vmatprep.subr.mxu0 0.0
        %495 = vmatpush2.msra.mxu0 0.0
        %496 = vmatprep.subr.mxu0 0.0
        %497 = vmatpush2.msra.mxu0 0.0
        %498 = vmatprep.subr.mxu0 0.0
        %499 = vmatpush2.msra.mxu0 0.0
        %500 = vmatprep.subr.mxu0 0.0
        %501 = vmatpush2.msra.mxu0 0.0
        %502 = vmatprep.subr.mxu0 0.0
        %503 = vmatpush2.msra.mxu0 0.0
        %504 = vmatprep.subr.mxu0 0.0
        %505 = vmatpush2.msra.mxu0 0.0
        %506 = vmatprep.subr.mxu0 0.0
        %507 = vmatpush2.msra.mxu0 0.0
        %508 = vmatprep.subr.mxu0 0.0
        %509 = vmatpush2.msra.mxu0 0.0
        %510 = vmatprep.subr.mxu0 0.0
        %511 = vmatpush2.msra.mxu0 0.0
        %512 = vmatprep.subr.mxu0 0.0
        %513 = vmatpush2.msra.mxu0 0.0
        %514 = vmatprep.subr.mxu0 0.0
        %515 = vmatpush2.msra.mxu0 0.0
        %516 = vmatprep.mubr.f32.mxu0 0.0
        %517 = vmatmul.mubr.f32.gmra.mxu0 %v447
        %v518 = vpop.f32.mrf.mxu0
        %v519 = vadd.f32 %v438, %v518
        %v520 = vpop.f32.mrf.mxu0
        %521 = vmatprep.mubr.f32.mxu0 0.0
        %522 = vmatmul.mubr.f32.gmra.mxu0 %v450
        %v523 = vpop.f32.mrf.mxu0
        %v524 = vadd.f32 %v443, %v523
        %v525 = vpop.f32.mrf.mxu0
        %526 = vdwg.mxu0
        %v527 = vmul.f32 %v524, 1.442695
        %v528 = vpow.pop %v527
        %v529 = vld [vmem:[%s263] sm:$0xff]
        %v530 = vmul.f32 %v528, %v529
        %v531 = vadd.f32 %v519, %v530
        %v532 = vmul.f32 %v531, %v531
        %v533 = vmul.f32 %v529, %v529
        %v534 = vsub.f32 %v532, %v533
        %v535 = vmul.f32 %v534, 0.5
        %v536 = vsub.f32 %v535, %v524
        %v537 = vrot.slane %v536, 4
        %v538 = vadd.f32 %v536, %v537
        %v539 = vrot.slane %v538, 2
        %v540 = vadd.f32 %v538, %v539
        %v541 = vrot.slane %v540, 1
        %v542 = vadd.f32 %v540, %v541
        %543 = vst [vmem:[%s255] sm:$0xff] %v531
        %544 = vst [vmem:[%s255 + $0x8] sm:$0x1] %v542
        %s545 = sand.u32 %s164, 1
        %s546 = scalar_lea.sflag [#allocation3], %s545
        %s547 = sand.u32 %s164, 1
        %s548 = smul.addr %s547, 16
        %s549 = scalar_lea.vmem [#allocation2], %s548
        // Predicated region
        $region45: #{tpu_custom_call.1} parent=43 // pred_check
          %p550 = pneg %p174
        $region46: #{tpu_custom_call.1} parent=43 // pred_check_branch
          %552 = sbr.rel (%p550) target = $region48
        $region47: #{tpu_custom_call.1} parent=43 // pred_region
          %s554 = ssub.s32 256, 256
          %555 = vsyncadd %s546, %s554
          %s556 = smul.addr %s20, 128
          %s557 = scalar_lea.hbm %s6, %s556
          %s558 = sshll.u32 %s549, 4
          %s559 = int_to_ptr.vmem [resolvable:$true] %s558
          %564 = dma.vmem_to_hbm [thread:$0]  %s559, 256, %s557, %s546, 128, 256, 8
        $region48: #{tpu_custom_call.1} parent=43 // pred_fallthru
          _
      $region44: #{tpu_custom_call.1} parent=5 // pred_fallthru
        _
      %p565 = scmp.le.s32.totalorder 2, %s15
      // Predicated region
      $region49: #{tpu_custom_call.1} parent=5 // pred_check
        %p566 = pneg %p565
      $region50: #{tpu_custom_call.1} parent=5 // pred_check_branch
        %568 = sbr.rel (%p566) target = $region52
      $region51: #{tpu_custom_call.1} parent=5 // pred_region
        %s569 = ssub.s32 %s15, 2
        // Predicated region
        $region53: #{tpu_custom_call.1} parent=51 // pred_check
          %p570 = pneg %p180
        $region54: #{tpu_custom_call.1} parent=51 // pred_check_branch
          %572 = sbr.rel (%p570) target = $region56
        $region55: #{tpu_custom_call.1} parent=51 // pred_region
          %s573 = sand.u32 %s165, 1
          %s574 = scalar_lea.sflag [#allocation3], %s573
          %s575 = sand.u32 %s165, 1
          %s576 = smul.addr %s575, 16
          %s577 = scalar_lea.vmem [#allocation2], %s576
          %578 = dma.done %s574, 256
        $region56: #{tpu_custom_call.1} parent=51 // pred_fallthru
          _
      $region52: #{tpu_custom_call.1} parent=5 // pred_fallthru
        _
    $region6: #{tpu_custom_call.1} parent=1 // loop_footer
      %s19 = sadd.s32 1, %s15
    $region7: #{tpu_custom_call.1} parent=1 // loop_footer_branch
      %14 = sbr.rel target = $region3
    $region8: #{tpu_custom_call.1} parent=1 // loop_exit
      _
    %579 = vsyncpa [#allocation3], 1
    %s580 = scalar_lea.sflag [#allocation3], 1
    %581 = vsyncpa %s580, 1

</llo_original>
